<compile_context>
chip_gen: v5e
topology: v5e:2x2
jax: 0.10.0
libtpu: 0.0.40
codegen_flags: <defaults>
</compile_context>

<pallas_src>
import math

import jax
import jax.numpy as jnp
from jax import lax
from jax.experimental import pallas as pl
from jax.experimental.pallas import tpu as pltpu

K_MAX = 7                  # largest kernel; all branches embedded into 7x7
PAD = (K_MAX - 1) // 2     # = 3


# ---------------------------------------------------------------------------
# Pallas kernel: transposed matmul + folded-BN bias + ReLU (f32 epilogue).
# ---------------------------------------------------------------------------
def _conv_bn_relu_kernel(p_ref, w_ref, b_ref, o_ref):
    """One (batch, spatial-tile) block.

    p_ref : (KKC, TM)  bf16  im2col patches, transposed (K in sublanes, pixels in lanes)
    w_ref : (C, KKC)   bf16  fused conv weights with BN scale folded in
    b_ref : (C, 1)     f32   folded conv-bias + BN shift (broadcast over lanes)
    o_ref : (C, TM)    bf16  lane-dense NCHW-flat output block (C = 128 sublanes)
    """
    acc = jnp.dot(w_ref[...], p_ref[...], preferred_element_type=jnp.float32)
    y = acc + b_ref[...]                                   # f32 epilogue
    o_ref[...] = jnp.maximum(y, 0.0).astype(o_ref.dtype)   # ReLU, cast to bf16


# ---------------------------------------------------------------------------
# Parameter construction (deterministic, mirrors the PyTorch __init__ shapes).
# ---------------------------------------------------------------------------
def init_params(key, in_chans=3, embed_dim=128):
    c = embed_dim // 4
    params = []
    for k in (1, 3, 5, 7):
        key, kw_, kb_, kg, kbeta, kmean, kvar = jax.random.split(key, 7)
        fan_in = in_chans * k * k
        bound = 1.0 / math.sqrt(fan_in)
        w = jax.random.uniform(kw_, (k, k, in_chans, c), jnp.float32,
                               minval=-bound, maxval=bound)
        b = jax.random.uniform(kb_, (c,), jnp.float32,
                               minval=-bound, maxval=bound)
        gamma = 1.0 + 0.1 * jax.random.normal(kg, (c,), jnp.float32)
        beta = 0.1 * jax.random.normal(kbeta, (c,), jnp.float32)
        mean = 0.1 * jax.random.normal(kmean, (c,), jnp.float32)
        var = 1.0 + 0.1 * jax.random.uniform(kvar, (c,), jnp.float32)
        params.append(dict(w=w, b=b, gamma=gamma, beta=beta, mean=mean, var=var))
    return params


# ---------------------------------------------------------------------------
# Fuse branch params: embed KxK weights into 7x7, fold BN scale into weights,
# fold conv bias + BN shift into a single per-channel bias.
# ---------------------------------------------------------------------------
def _fuse_params(params, eps=1e-5):
    Cin = params[0]["w"].shape[2]
    w_parts, bias_parts = [], []
    for p in params:
        k = p["w"].shape[0]
        off = (K_MAX - k) // 2
        w7 = jnp.zeros((K_MAX, K_MAX, Cin, p["w"].shape[3]), jnp.float32)
        w7 = w7.at[off:off + k, off:off + k].set(p["w"])
        inv_std = 1.0 / jnp.sqrt(p["var"] + eps)
        scale = p["gamma"] * inv_std                       # (c,)
        w_parts.append(w7 * scale)                         # fold BN scale into W
        bias_parts.append(p["beta"] + (p["b"] - p["mean"]) * scale)
    w_fused = jnp.concatenate(w_parts, axis=-1)            # (7, 7, Cin, C)
    C = w_fused.shape[-1]
    # K ordering (kh, kw, c) with c fastest; transposed so Cout is the sublane dim.
    w_t = w_fused.reshape(K_MAX * K_MAX * Cin, C).T        # (C, KKC) f32
    bias = jnp.concatenate(bias_parts).reshape(C, 1).astype(jnp.float32)
    return w_t, bias


def _spatial_tiling(hw):
    """Lane-dense spatial tile (multiple of 128).  Sized so per-grid-step
    overhead (~0.35us) is amortized even at v7x HBM bandwidth (2K-4K pixels),
    while staying far under the 32 MiB default scoped VMEM / v7x 64 MiB."""
    if hw <= 4096:
        tm = max(128, -(-hw // 128) * 128)
        return tm, tm
    for tm in (4096, 3584, 3072, 2816, 2560, 2304, 2048):   # prefer exact divisor
        if hw % tm == 0:
            return tm, hw
    return 4096, -(-hw // 4096) * 4096                       # pad up, slice later


# ---------------------------------------------------------------------------
# Wrapper: bf16 im2col (transposed), single pallas_call, NCHW output directly.
# ---------------------------------------------------------------------------
def groupe_mfpvm_forward(x_nchw, params, *, compute_dtype=jnp.bfloat16):
    """Matches Groupe_MFPVM.forward: returns (x1, x2, x3, x4), each NCHW (bf16)."""
    B, Cin, H, W = x_nchw.shape
    w_t, bias = _fuse_params(params)           # (C, KKC) f32, (C, 1) f32
    C, KKC = w_t.shape
    HW = H * W
    TM, HW_pad = _spatial_tiling(HW)
    n_tiles = HW_pad // TM

    # Cast to bf16 BEFORE building the im2col slices, pad ONCE for the 7x7
    # receptive field (smaller kernels are centered inside the 7x7 weight).
    xpad = jnp.pad(x_nchw.astype(compute_dtype),
                   ((0, 0), (0, 0), (PAD, PAD), (PAD, PAD)))   # (B, Cin, H+6, W+6)

    # Transposed im2col: channel/tap axis second-to-last, pixels last.
    # Ordering (kh, kw, c) with c fastest matches the weight reshape above.
    cols = [xpad[:, :, kh:kh + H, kw:kw + W]
            for kh in range(K_MAX) for kw in range(K_MAX)]
    p_t = jnp.concatenate(cols, axis=1).reshape(B, KKC, HW)    # (B, 147, HW) bf16
    if HW_pad != HW:
        p_t = jnp.pad(p_t, ((0, 0), (0, 0), (0, HW_pad - HW)))

    w_t = w_t.astype(compute_dtype)

    cost = pl.CostEstimate(
        flops=2 * B * HW_pad * KKC * C,
        transcendentals=0,
        bytes_accessed=(p_t.size * p_t.dtype.itemsize
                        + w_t.size * w_t.dtype.itemsize
                        + bias.size * 4
                        + B * HW_pad * C * 2))

    out = pl.pallas_call(
        _conv_bn_relu_kernel,
        out_shape=jax.ShapeDtypeStruct((B, C, HW_pad), compute_dtype),
        grid=(B, n_tiles),
        in_specs=[
            pl.BlockSpec((pl.Squeezed(), KKC, TM), lambda b, t: (b, 0, t)),
            pl.BlockSpec((C, KKC), lambda b, t: (0, 0)),
            pl.BlockSpec((C, 1), lambda b, t: (0, 0)),
        ],
        out_specs=pl.BlockSpec((pl.Squeezed(), C, TM), lambda b, t: (b, 0, t)),
        compiler_params=pltpu.CompilerParams(
            dimension_semantics=("parallel", "parallel"),
            # Let XLA fuse the im2col producer into the kernel's input instead
            # of materializing it separately in HBM (review item 1, option b).
            allow_input_fusion=[True, False, False]),
        cost_estimate=cost,
    )(p_t, w_t, bias)

    # Output is already NCHW-flat (B, C, HW_pad): drop pad columns, reshape,
    # and split the fused 128 channels into the four 32-channel branch outputs
    # (contiguous slices — no transpose pass).
    out = out[:, :, :HW].reshape(B, C, H, W)
    c4 = C // 4
    return tuple(out[:, i * c4:(i + 1) * c4] for i in range(4))


# ---------------------------------------------------------------------------
# Plain-JAX reference for verification (f32).
# ---------------------------------------------------------------------------
def _ref_branch(x_nchw, p, eps=1e-5):
    y = lax.conv_general_dilated(
        x_nchw, p["w"], window_strides=(1, 1), padding="SAME",
        dimension_numbers=("NCHW", "HWIO", "NCHW"))
    y = y + p["b"][None, :, None, None]
    inv_std = 1.0 / jnp.sqrt(p["var"] + eps)
    y = (p["gamma"] * inv_std)[None, :, None, None] * (
        y - p["mean"][None, :, None, None]) + p["beta"][None, :, None, None]
    return jnp.maximum(y, 0.0)


def reference_forward(x_nchw, params):
    return tuple(_ref_branch(x_nchw, p) for p in params)


if __name__ == "__main__":
    in_chans, embed_dim = 3, 128
    B, H, W = 2, 16, 16

    key = jax.random.PRNGKey(0)
    pkey, xkey = jax.random.split(key)
    params = init_params(pkey, in_chans=in_chans, embed_dim=embed_dim)
    x = jax.random.normal(xkey, (B, in_chans, H, W), jnp.float32)

    fwd = jax.jit(groupe_mfpvm_forward)
    outs = jax.block_until_ready(fwd(x, params))

    refs = reference_forward(x, params)
    for o, r in zip(outs, refs):
        assert o.shape == r.shape == (B, embed_dim // 4, H, W), (o.shape, r.shape)
        err = float(jnp.max(jnp.abs(o.astype(jnp.float32) - r)))
        # bf16 matmul + bf16 output path -> looser tolerance than pure f32.
        assert err < 6e-2, err

    print("KERNEL_OK")
</pallas_src>

<mosaic_0001>
module attributes {stable_mosaic.version = 11 : i64} {
  func.func @_conv_bn_relu_kernel(%arg0: i32, %arg1: i32, %arg2: memref<1x147x256xbf16, #tpu.memory_space<vmem>>, %arg3: memref<128x147xbf16, #tpu.memory_space<vmem>>, %arg4: memref<128x1xf32, #tpu.memory_space<vmem>>, %arg5: memref<1x128x256xbf16, #tpu.memory_space<vmem>>) attributes {dimension_semantics = [#tpu.dimension_semantics<parallel>, #tpu.dimension_semantics<parallel>], iteration_bounds = array<i64: 2, 1>, scalar_prefetch = 0 : i64, scratch_operands = 0 : i64, tpu.core_type = #tpu.core_type<tc>, window_params = [{transform_indices = @transform_0, window_bounds = array<i64: 1, 147, 256>}, {pipeline_mode = #tpu.pipeline_mode<synchronous>, transform_indices = @transform_1, window_bounds = array<i64: 128, 147>}, {pipeline_mode = #tpu.pipeline_mode<synchronous>, transform_indices = @transform_2, window_bounds = array<i64: 128, 1>}, {transform_indices = @transform_3, window_bounds = array<i64: 1, 128, 256>}]} {
    %c0 = arith.constant 0 : index
    %c0_0 = arith.constant 0 : index
    %0 = vector.load %arg3[%c0, %c0_0] : memref<128x147xbf16, #tpu.memory_space<vmem>>, vector<128x147xbf16>
    %c0_1 = arith.constant 0 : index
    %c0_2 = arith.constant 0 : index
    %c0_3 = arith.constant 0 : index
    %1 = vector.load %arg2[%c0_1, %c0_2, %c0_3] : memref<1x147x256xbf16, #tpu.memory_space<vmem>>, vector<1x147x256xbf16>
    %2 = vector.shape_cast %1 : vector<1x147x256xbf16> to vector<147x256xbf16>
    %cst = arith.constant dense<0.000000e+00> : vector<128x256xf32>
    %3 = tpu.matmul %0, %2, %cst {dimension_numbers = #tpu.dot_dimension_numbers<[1], [0], [0], [1], [0, 0, 1, 1], [], []>} : vector<128x147xbf16>, vector<147x256xbf16>, vector<128x256xf32> -> vector<128x256xf32>
    %c0_4 = arith.constant 0 : index
    %c0_5 = arith.constant 0 : index
    %4 = vector.load %arg4[%c0_4, %c0_5] : memref<128x1xf32, #tpu.memory_space<vmem>>, vector<128x1xf32>
    %5 = vector.broadcast %4 : vector<128x1xf32> to vector<128x256xf32>
    %6 = arith.addf %3, %5 : vector<128x256xf32>
    %cst_6 = arith.constant 0.000000e+00 : f32
    %7 = vector.broadcast %cst_6 : f32 to vector<128x256xf32>
    %8 = arith.maximumf %6, %7 : vector<128x256xf32>
    %9 = arith.truncf %8 : vector<128x256xf32> to vector<128x256xbf16>
    %c0_7 = arith.constant 0 : index
    %c0_8 = arith.constant 0 : index
    %c0_9 = arith.constant 0 : index
    %10 = vector.load %arg5[%c0_7, %c0_8, %c0_9] : memref<1x128x256xbf16, #tpu.memory_space<vmem>>, vector<1x128x256xbf16>
    %11 = vector.shape_cast %10 : vector<1x128x256xbf16> to vector<128x256xbf16>
    %12 = vector.shape_cast %9 : vector<128x256xbf16> to vector<1x128x256xbf16>
    tpu.vector_store %arg5[%c0_7, %c0_8, %c0_9], %12 {strides = array<i32>} : memref<1x128x256xbf16, #tpu.memory_space<vmem>>, vector<1x128x256xbf16>,
    return
  }
  func.func @transform_0(%arg0: i32, %arg1: i32) -> (i32, i32, i32) {
    %c0_i32 = arith.constant 0 : i32
    %c0_i32_0 = arith.constant 0 : i32
    return %arg0, %c0_i32, %arg1 : i32, i32, i32
  }
  func.func @transform_1(%arg0: i32, %arg1: i32) -> (i32, i32) {
    %c0_i32 = arith.constant 0 : i32
    %c0_i32_0 = arith.constant 0 : i32
    %c0_i32_1 = arith.constant 0 : i32
    return %c0_i32, %c0_i32_0 : i32, i32
  }
  func.func @transform_2(%arg0: i32, %arg1: i32) -> (i32, i32) {
    %c0_i32 = arith.constant 0 : i32
    %c0_i32_0 = arith.constant 0 : i32
    %c0_i32_1 = arith.constant 0 : i32
    return %c0_i32, %c0_i32_0 : i32, i32
  }
  func.func @transform_3(%arg0: i32, %arg1: i32) -> (i32, i32, i32) {
    %c0_i32 = arith.constant 0 : i32
    %c0_i32_0 = arith.constant 0 : i32
    return %arg0, %c0_i32, %arg1 : i32, i32, i32
  }
}

</mosaic_0001>

<llo_original>
// kernel: groupe_mfpvm_forward.1
$region0: #{groupe_mfpvm_forward.1}
  #allocation0 [shape = 'u32[]', space=smem, size = 0x4, offset = 0x4, fixed_abs, tag = 'smem constant byte address 0x4 - core index']
  #allocation1 [shape = 'u32[72,128]{1,0:T(1,128)}', space=vmem, size = 0x9000, scoped, tag = 'internal scratch']
  %s0 = inlined_call_operand.vmem [shape: bf16[2,147,256], index: 0, kind: input, shape index: {}]
  %s1 = inlined_call_operand.vmem [shape: bf16[128,147], index: 1, kind: input, shape index: {}]
  %s2 = inlined_call_operand.vmem [shape: f32[128,1], index: 2, kind: input, shape index: {}]
  %s3 = inlined_call_operand.vmem [shape: bf16[2,128,256], index: 3, kind: output, shape index: {}]
  %s4 = sld [smem:[#allocation0]]
  $region45: #{groupe_mfpvm_forward.1} parent=0
    _
  %s6 = ssub.s32 1, %s4
  %s7 = scalar_select 0, %s6, %s4
  loop: start=0, step=1, limit=4
  $region2: #{groupe_mfpvm_forward.1} parent=0 // loop_pre_header
    _
  $region3: #{groupe_mfpvm_forward.1} parent=0 // loop_header
    %s9 = sphi 0, %s13
    %p10 = scmp.ge.s32.totalorder %s9, 4
    %s16 = sphi 0, %s28
    %s17 = sphi 0, %s24
    %s18 = sphi 0, %s16
    %s19 = sphi 0, %s17
    %s20 = sphi 0, %s18
    %s21 = sphi 0, %s19
    %s33 = sphi 0, %s35
    %s36 = sphi 0, %s33
    %s37 = sphi 0, %s36
    %s53 = sphi 0, %s37
    %s57 = sphi 0, %s57
    %s59 = sphi 0, %s57
    %s60 = sphi 0, %s59
    %s74 = sphi 0, %s60
    %s78 = sphi 0, %s78
    %s80 = sphi 0, %s78
    %s81 = sphi 0, %s80
    %s95 = sphi 0, %s81
    %s103 = sphi 0, %s105
    %s106 = sphi 0, %s103
    %s107 = sphi 0, %s106
    %s123 = sphi 0, %s107
  $region4: #{groupe_mfpvm_forward.1} parent=0 // loop_header_branch
    %12 = sbr.rel (%p10) target = $region8
  $region5: #{groupe_mfpvm_forward.1} parent=0 // loop_body
    %s14 = ssub.s32 %s9, 1
    %s15 = ssub.s32 %s9, 2
    %s22 = sadd.s32 1, %s17
    %p23 = scmp.ge.s32.totalorder %s22, 1
    %s24 = scalar_select %p23, 0, %s22
    %s25 = sadd.s32 1, %s16
    %s26 = scalar_select %p23, %s25, %s16
    %p27 = scmp.ge.s32.totalorder %s26, 2
    %s28 = scalar_select %p27, 0, %s26
    %s29 = ssub.s32 %s16, %s28
    %s30 = ssub.s32 %s17, %s24
    %s31 = sor.u32 %s29, %s30
    %p32 = scmp.eq.s32.totalorder %s31, 0
    %s34 = sadd.s32 %s33, 1
    %s35 = scalar_select %p32, %s33, %s34
    %p38 = pneg %p32
    %p39 = scmp.eq.s32.totalorder %s9, 1
    %p40 = por %p38, %p39
    %p41 = scmp.ne.s32.totalorder %s33, %s36
    %p42 = scmp.eq.s32.totalorder %s9, 0
    %p43 = por %p41, %p42
    %p44 = scmp.ne.s32.totalorder %s33, %s36
    %p45 = scmp.eq.s32.totalorder %s14, 1
    %p46 = por %p44, %p45
    %p47 = scmp.ne.s32.totalorder %s36, %s37
    %p48 = scmp.eq.s32.totalorder %s14, 0
    %p49 = por %p47, %p48
    %p50 = scmp.ne.s32.totalorder %s36, %s37
    %p51 = scmp.eq.s32.totalorder %s15, 1
    %p52 = por %p50, %p51
    %p54 = scmp.ne.s32.totalorder %s37, %s53
    %p55 = scmp.eq.s32.totalorder %s15, 0
    %p56 = por %p54, %p55
    %s58 = sadd.s32 %s57, 1
    %p61 = scmp.eq.s32.totalorder %s9, 1
    %p62 = scmp.ne.s32.totalorder %s57, %s59
    %p63 = scmp.eq.s32.totalorder %s9, 0
    %p64 = por %p62, %p63
    %p65 = scmp.ne.s32.totalorder %s57, %s59
    %p66 = scmp.eq.s32.totalorder %s14, 1
    %p67 = por %p65, %p66
    %p68 = scmp.ne.s32.totalorder %s59, %s60
    %p69 = scmp.eq.s32.totalorder %s14, 0
    %p70 = por %p68, %p69
    %p71 = scmp.ne.s32.totalorder %s59, %s60
    %p72 = scmp.eq.s32.totalorder %s15, 1
    %p73 = por %p71, %p72
    %p75 = scmp.ne.s32.totalorder %s60, %s74
    %p76 = scmp.eq.s32.totalorder %s15, 0
    %p77 = por %p75, %p76
    %s79 = sadd.s32 %s78, 1
    %p82 = scmp.eq.s32.totalorder %s9, 1
    %p83 = scmp.ne.s32.totalorder %s78, %s80
    %p84 = scmp.eq.s32.totalorder %s9, 0
    %p85 = por %p83, %p84
    %p86 = scmp.ne.s32.totalorder %s78, %s80
    %p87 = scmp.eq.s32.totalorder %s14, 1
    %p88 = por %p86, %p87
    %p89 = scmp.ne.s32.totalorder %s80, %s81
    %p90 = scmp.eq.s32.totalorder %s14, 0
    %p91 = por %p89, %p90
    %p92 = scmp.ne.s32.totalorder %s80, %s81
    %p93 = scmp.eq.s32.totalorder %s15, 1
    %p94 = por %p92, %p93
    %p96 = scmp.ne.s32.totalorder %s81, %s95
    %p97 = scmp.eq.s32.totalorder %s15, 0
    %p98 = por %p96, %p97
    %s99 = ssub.s32 %s16, %s28
    %s100 = ssub.s32 %s17, %s24
    %s101 = sor.u32 %s99, %s100
    %p102 = scmp.eq.s32.totalorder %s101, 0
    %s104 = sadd.s32 %s103, 1
    %s105 = scalar_select %p102, %s103, %s104
    %p108 = pneg %p102
    %p109 = scmp.eq.s32.totalorder %s9, 1
    %p110 = por %p108, %p109
    %p111 = scmp.ne.s32.totalorder %s103, %s106
    %p112 = scmp.eq.s32.totalorder %s9, 0
    %p113 = por %p111, %p112
    %p114 = scmp.ne.s32.totalorder %s103, %s106
    %p115 = scmp.eq.s32.totalorder %s14, 1
    %p116 = por %p114, %p115
    %p117 = scmp.ne.s32.totalorder %s106, %s107
    %p118 = scmp.eq.s32.totalorder %s14, 0
    %p119 = por %p117, %p118
    %p120 = scmp.ne.s32.totalorder %s106, %s107
    %p121 = scmp.eq.s32.totalorder %s15, 1
    %p122 = por %p120, %p121
    %p124 = scmp.ne.s32.totalorder %s107, %s123
    %p125 = scmp.eq.s32.totalorder %s15, 0
    %p126 = por %p124, %p125
    %p127 = scmp.le.s32.totalorder 1, %s9
    %p128 = scmp.lt.s32.totalorder %s9, 3
    %p129 = pnand %p127, %p128
    %p130 = pneg %p129
    // Predicated region
    $region9: #{groupe_mfpvm_forward.1} parent=5 // pred_check
      _
    $region10: #{groupe_mfpvm_forward.1} parent=5 // pred_check_branch
      %132 = sbr.rel (%p129) target = $region12
    $region11: #{groupe_mfpvm_forward.1} parent=5 // pred_region
      %s133 = ssub.s32 %s9, 1
      // Predicated region
      $region13: #{groupe_mfpvm_forward.1} parent=11 // pred_check
        %p134 = pneg %p70
      $region14: #{groupe_mfpvm_forward.1} parent=11 // pred_check_branch
        %136 = sbr.rel (%p134) target = $region16
      $region15: #{groupe_mfpvm_forward.1} parent=11 // pred_region
        _
      $region16: #{groupe_mfpvm_forward.1} parent=11 // pred_fallthru
        _
      // Predicated region
      $region17: #{groupe_mfpvm_forward.1} parent=11 // pred_check
        %p137 = pneg %p91
      $region18: #{groupe_mfpvm_forward.1} parent=11 // pred_check_branch
        %139 = sbr.rel (%p137) target = $region20
      $region19: #{groupe_mfpvm_forward.1} parent=11 // pred_region
        _
      $region20: #{groupe_mfpvm_forward.1} parent=11 // pred_fallthru
        _
    $region12: #{groupe_mfpvm_forward.1} parent=5 // pred_fallthru
      _
    %p140 = scmp.lt.s32.totalorder %s9, 2
    // Predicated region
    $region21: #{groupe_mfpvm_forward.1} parent=5 // pred_check
      %p141 = pneg %p140
    $region22: #{groupe_mfpvm_forward.1} parent=5 // pred_check_branch
      %143 = sbr.rel (%p141) target = $region24
    $region23: #{groupe_mfpvm_forward.1} parent=5 // pred_region
      // Predicated region
      $region25: #{groupe_mfpvm_forward.1} parent=23 // pred_check
        %p144 = pneg %p43
      $region26: #{groupe_mfpvm_forward.1} parent=23 // pred_check_branch
        %146 = sbr.rel (%p144) target = $region28
      $region27: #{groupe_mfpvm_forward.1} parent=23 // pred_region
        %s147 = smul.u32 2, %s17
        %p148 = scmp.lt.s32.totalorder %s16, 1
        %s149 = scalar_select %p148, %s16, 1
        %p150 = scmp.lt.s32.totalorder %s147, 1
        %s151 = scalar_select %p150, %s147, 1
        %s152 = smul.addr %s149, 38
        %s153 = sadd.s32 %s151, %s152
        %s154 = smul.addr %s153, 4
        %s155 = scalar_lea.vmem %s0, %s154
        %s156 = smul.u32 2, %s17
      $region28: #{groupe_mfpvm_forward.1} parent=23 // pred_fallthru
        _
    $region24: #{groupe_mfpvm_forward.1} parent=5 // pred_fallthru
      _
    %p157 = scmp.le.s32.totalorder 1, %s9
    %p158 = scmp.lt.s32.totalorder %s9, 3
    %p159 = pnand %p157, %p158
    %p160 = pneg %p159
    // Predicated region
    $region29: #{groupe_mfpvm_forward.1} parent=5 // pred_check
      _
    $region30: #{groupe_mfpvm_forward.1} parent=5 // pred_check_branch
      %162 = sbr.rel (%p159) target = $region32
    $region31: #{groupe_mfpvm_forward.1} parent=5 // pred_region
      %s163 = ssub.s32 %s9, 1
      %s164 = smul.u32 2, %s19
      %p165 = scmp.lt.s32.totalorder %s18, 1
      %s166 = scalar_select %p165, %s18, 1
      %p167 = scmp.lt.s32.totalorder %s164, 1
      %s168 = scalar_select %p167, %s164, 1
      %s169 = smul.addr %s166, 38
      %s170 = sadd.s32 %s168, %s169
      %s171 = smul.addr %s170, 4
      %s172 = scalar_lea.vmem %s0, %s171
      %p173 = pneg %p49
      %p174 = pneg %p46
      %p175 = pneg %p70
      %p176 = pneg %p67
      %p177 = pneg %p91
      %p178 = pneg %p88
      %p179 = pneg %p119
      %p180 = pneg %p116
      %s181 = smul.u32 2, %s19
      %p182 = scmp.lt.s32.totalorder %s18, 1
      %s183 = scalar_select %p182, %s18, 1
      %p184 = scmp.lt.s32.totalorder %s181, 1
      %s185 = scalar_select %p184, %s181, 1
      %s186 = smul.addr %s183, 32
      %s187 = sadd.s32 %s185, %s186
      %s188 = smul.addr %s187, 4
      %s189 = scalar_lea.vmem %s3, %s188
      %s190 = smul.u32 2, %s19
      %p191 = scmp.lt.s32.totalorder %s18, 1
      %s192 = scalar_select %p191, %s18, 1
      %p193 = scmp.lt.s32.totalorder %s190, 1
      %s194 = scalar_select %p193, %s190, 1
      %s195 = smul.addr %s192, 38
      %s196 = sadd.s32 %s194, %s195
      %s197 = smul.addr %s196, 4
      %s198 = scalar_lea.vmem %s0, %s197
      %s199 = smul.u32 2, %s19
      %s200 = smul.u32 2, %s19
      %p201 = scmp.lt.s32.totalorder %s18, 1
      %s202 = scalar_select %p201, %s18, 1
      %p203 = scmp.lt.s32.totalorder %s200, 1
      %s204 = scalar_select %p203, %s200, 1
      %s205 = smul.addr %s202, 32
      %s206 = sadd.s32 %s204, %s205
      %s207 = smul.addr %s206, 4
      %s208 = scalar_lea.vmem %s3, %s207
      %s209 = smul.u32 2, %s19
      %v211 = vld [vmem:[%s1] sm:$0xff]
      %v212 = vld [vmem:[%s1 + $0x8] sm:$0xff]
      %v213 = vld [vmem:[%s1 + $0x10] sm:$0xff]
      %v214 = vld [vmem:[%s1 + $0x18] sm:$0xff]
      %v215 = vld [vmem:[%s1 + $0x20] sm:$0xff]
      %v216 = vld [vmem:[%s1 + $0x28] sm:$0xff]
      %v217 = vld [vmem:[%s1 + $0x30] sm:$0xff]
      %v218 = vld [vmem:[%s1 + $0x38] sm:$0xff]
      %v219 = vld [vmem:[%s1 + $0x40] sm:$0xff]
      %v220 = vld [vmem:[%s1 + $0x48] sm:$0xff]
      %v221 = vld [vmem:[%s1 + $0x50] sm:$0xff]
      %v222 = vld [vmem:[%s1 + $0x58] sm:$0xff]
      %v223 = vld [vmem:[%s1 + $0x60] sm:$0xff]
      %v224 = vld [vmem:[%s1 + $0x68] sm:$0xff]
      %v225 = vld [vmem:[%s1 + $0x70] sm:$0xff]
      %v226 = vld [vmem:[%s1 + $0x78] sm:$0xff]
      %v227 = vld [vmem:[%s198] sm:$0xff]
      %v228 = vld [vmem:[%s198 + $0x8] sm:$0xff]
      %v229 = vld [vmem:[%s198 + $0x10] sm:$0xff]
      %v230 = vld [vmem:[%s198 + $0x18] sm:$0xff]
      %v231 = vld [vmem:[%s198 + $0x20] sm:$0xff]
      %v232 = vld [vmem:[%s198 + $0x28] sm:$0xff]
      %v233 = vld [vmem:[%s198 + $0x30] sm:$0xff]
      %v234 = vld [vmem:[%s198 + $0x38] sm:$0xff]
      %v235 = vld [vmem:[%s198 + $0x40] sm:$0xff]
      %v236 = vld [vmem:[%s198 + $0x48] sm:$0xff]
      %v237 = vld [vmem:[%s198 + $0x50] sm:$0xff]
      %v238 = vld [vmem:[%s198 + $0x58] sm:$0xff]
      %v239 = vld [vmem:[%s198 + $0x60] sm:$0xff]
      %v240 = vld [vmem:[%s198 + $0x68] sm:$0xff]
      %v241 = vld [vmem:[%s198 + $0x70] sm:$0xff]
      %v242 = vld [vmem:[%s198 + $0x78] sm:$0xff]
      %v243 = vld [vmem:[%s198 + $0x80] sm:$0xff]
      %v244 = vld [vmem:[%s198 + $0x88] sm:$0xff]
      %v245 = vld [vmem:[%s198 + $0x90] sm:$0x33]
      %v246 = vld [vmem:[%s2] sm:$0xff]
      %v247 = vld [vmem:[%s2 + $0x8] sm:$0xff]
      %v248 = vld [vmem:[%s2 + $0x10] sm:$0xff]
      %v249 = vld [vmem:[%s2 + $0x18] sm:$0xff]
      %v250 = vld [vmem:[%s2 + $0x20] sm:$0xff]
      %v251 = vld [vmem:[%s2 + $0x28] sm:$0xff]
      %v252 = vld [vmem:[%s2 + $0x30] sm:$0xff]
      %v253 = vld [vmem:[%s2 + $0x38] sm:$0xff]
      %v254 = vld [vmem:[%s2 + $0x40] sm:$0xff]
      %v255 = vld [vmem:[%s2 + $0x48] sm:$0xff]
      %v256 = vld [vmem:[%s2 + $0x50] sm:$0xff]
      %v257 = vld [vmem:[%s2 + $0x58] sm:$0xff]
      %v258 = vld [vmem:[%s2 + $0x60] sm:$0xff]
      %v259 = vld [vmem:[%s2 + $0x68] sm:$0xff]
      %v260 = vld [vmem:[%s2 + $0x70] sm:$0xff]
      %v261 = vld [vmem:[%s2 + $0x78] sm:$0xff]
      %263 = vset.pattern.permute.xlu0 0
      %264 = vperm.xlu0 %263, %v246
      %v265 = vpop.permute.xlu0 %264
      %268 = vset.pattern.permute.xlu0 0
      %269 = vperm.xlu0 %268, %v247
      %v270 = vpop.permute.xlu0 %269
      %273 = vset.pattern.permute.xlu0 0
      %274 = vperm.xlu0 %273, %v248
      %v275 = vpop.permute.xlu0 %274
      %278 = vset.pattern.permute.xlu0 0
      %279 = vperm.xlu0 %278, %v249
      %v280 = vpop.permute.xlu0 %279
      %283 = vset.pattern.permute.xlu0 0
      %284 = vperm.xlu0 %283, %v250
      %v285 = vpop.permute.xlu0 %284
      %288 = vset.pattern.permute.xlu0 0
      %289 = vperm.xlu0 %288, %v251
      %v290 = vpop.permute.xlu0 %289
      %293 = vset.pattern.permute.xlu0 0
      %294 = vperm.xlu0 %293, %v252
      %v295 = vpop.permute.xlu0 %294
      %298 = vset.pattern.permute.xlu0 0
      %299 = vperm.xlu0 %298, %v253
      %v300 = vpop.permute.xlu0 %299
      %303 = vset.pattern.permute.xlu0 0
      %304 = vperm.xlu0 %303, %v254
      %v305 = vpop.permute.xlu0 %304
      %308 = vset.pattern.permute.xlu0 0
      %309 = vperm.xlu0 %308, %v255
      %v310 = vpop.permute.xlu0 %309
      %313 = vset.pattern.permute.xlu0 0
      %314 = vperm.xlu0 %313, %v256
      %v315 = vpop.permute.xlu0 %314
      %318 = vset.pattern.permute.xlu0 0
      %319 = vperm.xlu0 %318, %v257
      %v320 = vpop.permute.xlu0 %319
      %323 = vset.pattern.permute.xlu0 0
      %324 = vperm.xlu0 %323, %v258
      %v325 = vpop.permute.xlu0 %324
      %328 = vset.pattern.permute.xlu0 0
      %329 = vperm.xlu0 %328, %v259
      %v330 = vpop.permute.xlu0 %329
      %333 = vset.pattern.permute.xlu0 0
      %334 = vperm.xlu0 %333, %v260
      %v335 = vpop.permute.xlu0 %334
      %338 = vset.pattern.permute.xlu0 0
      %339 = vperm.xlu0 %338, %v261
      %v340 = vpop.permute.xlu0 %339
      %v358 = vunpack.c.l.b16 %v211
      %v359 = vunpack.c.h.b16 %v211
      %v360 = vunpack.c.l.b16 %v212
      %v361 = vunpack.c.h.b16 %v212
      %v362 = vunpack.c.l.b16 %v213
      %v363 = vunpack.c.h.b16 %v213
      %v364 = vunpack.c.l.b16 %v214
      %v365 = vunpack.c.h.b16 %v214
      %v366 = vunpack.c.l.b16 %v215
      %v367 = vunpack.c.h.b16 %v215
      %v368 = vunpack.c.l.b16 %v216
      %v369 = vunpack.c.h.b16 %v216
      %v370 = vunpack.c.l.b16 %v217
      %v371 = vunpack.c.h.b16 %v217
      %v372 = vunpack.c.l.b16 %v218
      %v373 = vunpack.c.h.b16 %v218
      %v374 = vunpack.c.l.b16 %v219
      %v375 = vunpack.c.h.b16 %v219
      %v376 = vunpack.c.l.b16 %v220
      %v377 = vunpack.c.h.b16 %v220
      %v378 = vunpack.c.l.b16 %v221
      %v379 = vunpack.c.h.b16 %v221
      %v380 = vunpack.c.l.b16 %v222
      %v381 = vunpack.c.h.b16 %v222
      %v382 = vunpack.c.l.b16 %v223
      %v383 = vunpack.c.h.b16 %v223
      %v384 = vunpack.c.l.b16 %v224
      %v385 = vunpack.c.h.b16 %v224
      %v386 = vunpack.c.l.b16 %v225
      %v387 = vunpack.c.h.b16 %v225
      %v388 = vunpack.c.l.b16 %v226
      %v389 = vunpack.c.h.b16 %v226
      %v390 = vpack.c.b16 %v360, %v358
      %v391 = vpack.c.b16 %v361, %v359
      %v392 = vpack.c.b16 %v364, %v362
      %v393 = vpack.c.b16 %v365, %v363
      %v394 = vpack.c.b16 %v368, %v366
      %v395 = vpack.c.b16 %v369, %v367
      %v396 = vpack.c.b16 %v372, %v370
      %v397 = vpack.c.b16 %v373, %v371
      %v398 = vpack.c.b16 %v376, %v374
      %v399 = vpack.c.b16 %v377, %v375
      %v400 = vpack.c.b16 %v380, %v378
      %v401 = vpack.c.b16 %v381, %v379
      %v402 = vpack.c.b16 %v384, %v382
      %v403 = vpack.c.b16 %v385, %v383
      %v404 = vpack.c.b16 %v388, %v386
      %v405 = vpack.c.b16 %v389, %v387
      %v433 = vunpack.c.l.b16 %v227
      %v434 = vunpack.c.h.b16 %v227
      %v435 = vunpack.c.l.b16 %v228
      %v436 = vunpack.c.h.b16 %v228
      %v437 = vunpack.c.l.b16 %v229
      %v438 = vunpack.c.h.b16 %v229
      %v439 = vunpack.c.l.b16 %v230
      %v440 = vunpack.c.h.b16 %v230
      %v441 = vunpack.c.l.b16 %v231
      %v442 = vunpack.c.h.b16 %v231
      %v443 = vunpack.c.l.b16 %v232
      %v444 = vunpack.c.h.b16 %v232
      %v445 = vunpack.c.l.b16 %v233
      %v446 = vunpack.c.h.b16 %v233
      %v447 = vunpack.c.l.b16 %v234
      %v448 = vunpack.c.h.b16 %v234
      %v449 = vunpack.c.l.b16 %v235
      %v450 = vunpack.c.h.b16 %v235
      %v451 = vunpack.c.l.b16 %v236
      %v452 = vunpack.c.h.b16 %v236
      %v453 = vunpack.c.l.b16 %v237
      %v454 = vunpack.c.h.b16 %v237
      %v455 = vunpack.c.l.b16 %v238
      %v456 = vunpack.c.h.b16 %v238
      %v457 = vunpack.c.l.b16 %v239
      %v458 = vunpack.c.h.b16 %v239
      %v459 = vunpack.c.l.b16 %v240
      %v460 = vunpack.c.h.b16 %v240
      %v461 = vunpack.c.l.b16 %v241
      %v462 = vunpack.c.h.b16 %v241
      %v463 = vunpack.c.l.b16 %v242
      %v464 = vunpack.c.h.b16 %v242
      %v465 = vunpack.c.l.b16 %v243
      %v466 = vunpack.c.h.b16 %v243
      %v467 = vunpack.c.l.b16 %v244
      %v468 = vunpack.c.h.b16 %v244
      %v469 = vunpack.c.l.b16 %v245
      %v470 = vunpack.c.h.b16 %v245
      %v471 = vpack.c.b16 %v435, %v433
      %v472 = vpack.c.b16 %v436, %v434
      %v473 = vpack.c.b16 %v439, %v437
      %v474 = vpack.c.b16 %v440, %v438
      %v475 = vpack.c.b16 %v443, %v441
      %v476 = vpack.c.b16 %v444, %v442
      %v477 = vpack.c.b16 %v447, %v445
      %v478 = vpack.c.b16 %v448, %v446
      %v479 = vpack.c.b16 %v451, %v449
      %v480 = vpack.c.b16 %v452, %v450
      %v481 = vpack.c.b16 %v455, %v453
      %v482 = vpack.c.b16 %v456, %v454
      %v483 = vpack.c.b16 %v459, %v457
      %v484 = vpack.c.b16 %v460, %v458
      %v485 = vpack.c.b16 %v463, %v461
      %v486 = vpack.c.b16 %v464, %v462
      %v487 = vpack.c.b16 %v467, %v465
      %v488 = vpack.c.b16 %v468, %v466
      %v489 = vpack.c.b16 %v469, %v469
      %v490 = vpack.c.b16 %v470, %v470
      %vm509 = vcmask 154624
      %v511 = vsel %vm509, %v391, 0
      %v514 = vsel %vm509, %v393, 0
      %v517 = vsel %vm509, %v395, 0
      %v520 = vsel %vm509, %v397, 0
      %v523 = vsel %vm509, %v399, 0
      %v526 = vsel %vm509, %v401, 0
      %v529 = vsel %vm509, %v403, 0
      %v532 = vsel %vm509, %v405, 0
      %vm534 = vcmask 1040384
      %vm535 = vcmask 1041408
      %v536 = vsel %vm534, 4294967295, 65535
      %v537 = vsel %vm535, %v536, 0
      %v539 = vand.u32 %v489, %v537
      %v542 = vand.u32 %v490, %v537
      %544 = vmatpush.bf16.msra.mxu0 %v485
      %545 = vmatpush.bf16.msra.mxu0 %v483
      %546 = vmatpush.bf16.msra.mxu0 %v481
      %547 = vmatpush.bf16.msra.mxu0 %v479
      %548 = vmatpush.bf16.msra.mxu0 %v477
      %549 = vmatpush.bf16.msra.mxu0 %v475
      %550 = vmatpush.bf16.msra.mxu0 %v473
      %551 = vmatpush.bf16.msra.mxu0 %v471
      %552 = vmatmul.bf16.gmra.mxu0 %v390
      %v553 = vpop.f32.mrf.mxu0
      %v554 = vadd.f32 %v265, %v553
      %v555 = vpop.f32.mrf.mxu0
      %v556 = vadd.f32 %v270, %v555
      %557 = vmatmul.bf16.gmra.mxu0 %v392
      %v558 = vpop.f32.mrf.mxu0
      %v559 = vadd.f32 %v275, %v558
      %v560 = vpop.f32.mrf.mxu0
      %v561 = vadd.f32 %v280, %v560
      %562 = vmatmul.bf16.gmra.mxu0 %v394
      %v563 = vpop.f32.mrf.mxu0
      %v564 = vadd.f32 %v285, %v563
      %v565 = vpop.f32.mrf.mxu0
      %v566 = vadd.f32 %v290, %v565
      %567 = vmatmul.bf16.gmra.mxu0 %v396
      %v568 = vpop.f32.mrf.mxu0
      %v569 = vadd.f32 %v295, %v568
      %v570 = vpop.f32.mrf.mxu0
      %v571 = vadd.f32 %v300, %v570
      %572 = vmatmul.bf16.gmra.mxu0 %v398
      %v573 = vpop.f32.mrf.mxu0
      %v574 = vadd.f32 %v305, %v573
      %v575 = vpop.f32.mrf.mxu0
      %v576 = vadd.f32 %v310, %v575
      %577 = vmatmul.bf16.gmra.mxu0 %v400
      %v578 = vpop.f32.mrf.mxu0
      %v579 = vadd.f32 %v315, %v578
      %v580 = vpop.f32.mrf.mxu0
      %v581 = vadd.f32 %v320, %v580
      %582 = vmatmul.bf16.gmra.mxu0 %v402
      %v583 = vpop.f32.mrf.mxu0
      %v584 = vadd.f32 %v325, %v583
      %v585 = vpop.f32.mrf.mxu0
      %v586 = vadd.f32 %v330, %v585
      %587 = vmatmul.bf16.gmra.mxu0 %v404
      %v588 = vpop.f32.mrf.mxu0
      %v589 = vadd.f32 %v335, %v588
      %v590 = vpop.f32.mrf.mxu0
      %v591 = vadd.f32 %v340, %v590
      %592 = vdwg.mxu0
      %593 = vmatpush.bf16.msra.mxu0 0
      %594 = vmatpush.bf16.msra.mxu0 0
      %595 = vmatpush.bf16.msra.mxu0 0
      %596 = vmatpush.bf16.msra.mxu0 0
      %597 = vmatpush.bf16.msra.mxu0 0
      %598 = vmatpush.bf16.msra.mxu0 0
      %599 = vmatpush.bf16.msra.mxu0 %v539
      %600 = vmatpush.bf16.msra.mxu0 %v487
      %601 = vmatmul.bf16.gmra.mxu0 %v511
      %v602 = vpop.f32.mrf.mxu0
      %v603 = vadd.f32 %v554, %v602
      %v604 = vpop.f32.mrf.mxu0
      %v605 = vadd.f32 %v556, %v604
      %606 = vmatmul.bf16.gmra.mxu0 %v514
      %v607 = vpop.f32.mrf.mxu0
      %v608 = vadd.f32 %v559, %v607
      %v609 = vpop.f32.mrf.mxu0
      %v610 = vadd.f32 %v561, %v609
      %611 = vmatmul.bf16.gmra.mxu0 %v517
      %v612 = vpop.f32.mrf.mxu0
      %v613 = vadd.f32 %v564, %v612
      %v614 = vpop.f32.mrf.mxu0
      %v615 = vadd.f32 %v566, %v614
      %616 = vmatmul.bf16.gmra.mxu0 %v520
      %v617 = vpop.f32.mrf.mxu0
      %v618 = vadd.f32 %v569, %v617
      %v619 = vpop.f32.mrf.mxu0
      %v620 = vadd.f32 %v571, %v619
      %621 = vmatmul.bf16.gmra.mxu0 %v523
      %v622 = vpop.f32.mrf.mxu0
      %v623 = vadd.f32 %v574, %v622
      %v624 = vpop.f32.mrf.mxu0
      %v625 = vadd.f32 %v576, %v624
      %626 = vmatmul.bf16.gmra.mxu0 %v526
      %v627 = vpop.f32.mrf.mxu0
      %v628 = vadd.f32 %v579, %v627
      %v629 = vpop.f32.mrf.mxu0
      %v630 = vadd.f32 %v581, %v629
      %631 = vmatmul.bf16.gmra.mxu0 %v529
      %v632 = vpop.f32.mrf.mxu0
      %v633 = vadd.f32 %v584, %v632
      %v634 = vpop.f32.mrf.mxu0
      %v635 = vadd.f32 %v586, %v634
      %636 = vmatmul.bf16.gmra.mxu0 %v532
      %v637 = vpop.f32.mrf.mxu0
      %v638 = vadd.f32 %v589, %v637
      %v639 = vpop.f32.mrf.mxu0
      %v640 = vadd.f32 %v591, %v639
      %641 = vdwg.mxu0
      %642 = vmatpush.bf16.msra.mxu0 %v486
      %643 = vmatpush.bf16.msra.mxu0 %v484
      %644 = vmatpush.bf16.msra.mxu0 %v482
      %645 = vmatpush.bf16.msra.mxu0 %v480
      %646 = vmatpush.bf16.msra.mxu0 %v478
      %647 = vmatpush.bf16.msra.mxu0 %v476
      %648 = vmatpush.bf16.msra.mxu0 %v474
      %649 = vmatpush.bf16.msra.mxu0 %v472
      %650 = vmatmul.bf16.gmra.mxu0 %v390
      %v651 = vpop.f32.mrf.mxu0
      %v652 = vadd.f32 %v265, %v651
      %v653 = vpop.f32.mrf.mxu0
      %v654 = vadd.f32 %v270, %v653
      %655 = vmatmul.bf16.gmra.mxu0 %v392
      %v656 = vpop.f32.mrf.mxu0
      %v657 = vadd.f32 %v275, %v656
      %v658 = vpop.f32.mrf.mxu0
      %v659 = vadd.f32 %v280, %v658
      %660 = vmatmul.bf16.gmra.mxu0 %v394
      %v661 = vpop.f32.mrf.mxu0
      %v662 = vadd.f32 %v285, %v661
      %v663 = vpop.f32.mrf.mxu0
      %v664 = vadd.f32 %v290, %v663
      %665 = vmatmul.bf16.gmra.mxu0 %v396
      %v666 = vpop.f32.mrf.mxu0
      %v667 = vadd.f32 %v295, %v666
      %v668 = vpop.f32.mrf.mxu0
      %v669 = vadd.f32 %v300, %v668
      %670 = vmatmul.bf16.gmra.mxu0 %v398
      %v671 = vpop.f32.mrf.mxu0
      %v672 = vadd.f32 %v305, %v671
      %v673 = vpop.f32.mrf.mxu0
      %v674 = vadd.f32 %v310, %v673
      %675 = vmatmul.bf16.gmra.mxu0 %v400
      %v676 = vpop.f32.mrf.mxu0
      %v677 = vadd.f32 %v315, %v676
      %v678 = vpop.f32.mrf.mxu0
      %v679 = vadd.f32 %v320, %v678
      %680 = vmatmul.bf16.gmra.mxu0 %v402
      %v681 = vpop.f32.mrf.mxu0
      %v682 = vadd.f32 %v325, %v681
      %v683 = vpop.f32.mrf.mxu0
      %v684 = vadd.f32 %v330, %v683
      %685 = vmatmul.bf16.gmra.mxu0 %v404
      %v686 = vpop.f32.mrf.mxu0
      %v687 = vadd.f32 %v335, %v686
      %v688 = vpop.f32.mrf.mxu0
      %v689 = vadd.f32 %v340, %v688
      %690 = vdwg.mxu0
      %691 = vmatpush.bf16.msra.mxu0 0
      %692 = vmatpush.bf16.msra.mxu0 0
      %693 = vmatpush.bf16.msra.mxu0 0
      %694 = vmatpush.bf16.msra.mxu0 0
      %695 = vmatpush.bf16.msra.mxu0 0
      %696 = vmatpush.bf16.msra.mxu0 0
      %697 = vmatpush.bf16.msra.mxu0 %v542
      %698 = vmatpush.bf16.msra.mxu0 %v488
      %699 = vmatmul.bf16.gmra.mxu0 %v511
      %v700 = vpop.f32.mrf.mxu0
      %v701 = vadd.f32 %v652, %v700
      %v702 = vpop.f32.mrf.mxu0
      %v703 = vadd.f32 %v654, %v702
      %704 = vmatmul.bf16.gmra.mxu0 %v514
      %v705 = vpop.f32.mrf.mxu0
      %v706 = vadd.f32 %v657, %v705
      %v707 = vpop.f32.mrf.mxu0
      %v708 = vadd.f32 %v659, %v707
      %709 = vmatmul.bf16.gmra.mxu0 %v517
      %v710 = vpop.f32.mrf.mxu0
      %v711 = vadd.f32 %v662, %v710
      %v712 = vpop.f32.mrf.mxu0
      %v713 = vadd.f32 %v664, %v712
      %714 = vmatmul.bf16.gmra.mxu0 %v520
      %v715 = vpop.f32.mrf.mxu0
      %v716 = vadd.f32 %v667, %v715
      %v717 = vpop.f32.mrf.mxu0
      %v718 = vadd.f32 %v669, %v717
      %719 = vmatmul.bf16.gmra.mxu0 %v523
      %v720 = vpop.f32.mrf.mxu0
      %v721 = vadd.f32 %v672, %v720
      %v722 = vpop.f32.mrf.mxu0
      %v723 = vadd.f32 %v674, %v722
      %724 = vmatmul.bf16.gmra.mxu0 %v526
      %v725 = vpop.f32.mrf.mxu0
      %v726 = vadd.f32 %v677, %v725
      %v727 = vpop.f32.mrf.mxu0
      %v728 = vadd.f32 %v679, %v727
      %729 = vmatmul.bf16.gmra.mxu0 %v529
      %v730 = vpop.f32.mrf.mxu0
      %v731 = vadd.f32 %v682, %v730
      %v732 = vpop.f32.mrf.mxu0
      %v733 = vadd.f32 %v684, %v732
      %734 = vmatmul.bf16.gmra.mxu0 %v532
      %v735 = vpop.f32.mrf.mxu0
      %v736 = vadd.f32 %v687, %v735
      %v737 = vpop.f32.mrf.mxu0
      %v738 = vadd.f32 %v689, %v737
      %739 = vdwg.mxu0
      %v740 = vmax.f32 %v603, 0.0
      %v741 = vmax.f32 %v701, 0.0
      %v742 = vmax.f32 %v605, 0.0
      %v743 = vmax.f32 %v703, 0.0
      %v744 = vmax.f32 %v608, 0.0
      %v745 = vmax.f32 %v706, 0.0
      %v746 = vmax.f32 %v610, 0.0
      %v747 = vmax.f32 %v708, 0.0
      %v748 = vmax.f32 %v613, 0.0
      %v749 = vmax.f32 %v711, 0.0
      %v750 = vmax.f32 %v615, 0.0
      %v751 = vmax.f32 %v713, 0.0
      %v752 = vmax.f32 %v618, 0.0
      %v753 = vmax.f32 %v716, 0.0
      %v754 = vmax.f32 %v620, 0.0
      %v755 = vmax.f32 %v718, 0.0
      %v756 = vmax.f32 %v623, 0.0
      %v757 = vmax.f32 %v721, 0.0
      %v758 = vmax.f32 %v625, 0.0
      %v759 = vmax.f32 %v723, 0.0
      %v760 = vmax.f32 %v628, 0.0
      %v761 = vmax.f32 %v726, 0.0
      %v762 = vmax.f32 %v630, 0.0
      %v763 = vmax.f32 %v728, 0.0
      %v764 = vmax.f32 %v633, 0.0
      %v765 = vmax.f32 %v731, 0.0
      %v766 = vmax.f32 %v635, 0.0
      %v767 = vmax.f32 %v733, 0.0
      %v768 = vmax.f32 %v638, 0.0
      %v769 = vmax.f32 %v736, 0.0
      %v770 = vmax.f32 %v640, 0.0
      %v771 = vmax.f32 %v738, 0.0
      %v772 = vpack.c.bf16 %v741, %v740
      %v773 = vpack.c.bf16 %v743, %v742
      %v774 = vpack.c.bf16 %v745, %v744
      %v775 = vpack.c.bf16 %v747, %v746
      %v776 = vpack.c.bf16 %v749, %v748
      %v777 = vpack.c.bf16 %v751, %v750
      %v778 = vpack.c.bf16 %v753, %v752
      %v779 = vpack.c.bf16 %v755, %v754
      %v780 = vpack.c.bf16 %v757, %v756
      %v781 = vpack.c.bf16 %v759, %v758
      %v782 = vpack.c.bf16 %v761, %v760
      %v783 = vpack.c.bf16 %v763, %v762
      %v784 = vpack.c.bf16 %v765, %v764
      %v785 = vpack.c.bf16 %v767, %v766
      %v786 = vpack.c.bf16 %v769, %v768
      %v787 = vpack.c.bf16 %v771, %v770
      %788 = vst [vmem:[%s208] sm:$0xff] %v772
      %789 = vst [vmem:[%s208 + $0x8] sm:$0xff] %v773
      %790 = vst [vmem:[%s208 + $0x10] sm:$0xff] %v774
      %791 = vst [vmem:[%s208 + $0x18] sm:$0xff] %v775
      %792 = vst [vmem:[%s208 + $0x20] sm:$0xff] %v776
      %793 = vst [vmem:[%s208 + $0x28] sm:$0xff] %v777
      %794 = vst [vmem:[%s208 + $0x30] sm:$0xff] %v778
      %795 = vst [vmem:[%s208 + $0x38] sm:$0xff] %v779
      %796 = vst [vmem:[%s208 + $0x40] sm:$0xff] %v780
      %797 = vst [vmem:[%s208 + $0x48] sm:$0xff] %v781
      %798 = vst [vmem:[%s208 + $0x50] sm:$0xff] %v782
      %799 = vst [vmem:[%s208 + $0x58] sm:$0xff] %v783
      %800 = vst [vmem:[%s208 + $0x60] sm:$0xff] %v784
      %801 = vst [vmem:[%s208 + $0x68] sm:$0xff] %v785
      %802 = vst [vmem:[%s208 + $0x70] sm:$0xff] %v786
      %803 = vst [vmem:[%s208 + $0x78] sm:$0xff] %v787
      %s804 = smul.u32 2, %s19
      %p805 = scmp.lt.s32.totalorder %s18, 1
      %s806 = scalar_select %p805, %s18, 1
      %p807 = scmp.lt.s32.totalorder %s804, 1
      %s808 = scalar_select %p807, %s804, 1
      %s809 = smul.addr %s806, 32
      %s810 = sadd.s32 %s808, %s809
      %s811 = smul.addr %s810, 4
      %s812 = scalar_lea.vmem %s3, %s811
      // Predicated region
      $region33: #{groupe_mfpvm_forward.1} parent=31 // pred_check
        %p813 = pneg %p116
      $region34: #{groupe_mfpvm_forward.1} parent=31 // pred_check_branch
        %815 = sbr.rel (%p813) target = $region36
      $region35: #{groupe_mfpvm_forward.1} parent=31 // pred_region
        %s816 = smul.u32 2, %s19
      $region36: #{groupe_mfpvm_forward.1} parent=31 // pred_fallthru
        _
    $region32: #{groupe_mfpvm_forward.1} parent=5 // pred_fallthru
      _
    %p817 = scmp.le.s32.totalorder 2, %s9
    // Predicated region
    $region37: #{groupe_mfpvm_forward.1} parent=5 // pred_check
      %p818 = pneg %p817
    $region38: #{groupe_mfpvm_forward.1} parent=5 // pred_check_branch
      %820 = sbr.rel (%p818) target = $region40
    $region39: #{groupe_mfpvm_forward.1} parent=5 // pred_region
      %s821 = ssub.s32 %s9, 2
      // Predicated region
      $region41: #{groupe_mfpvm_forward.1} parent=39 // pred_check
        %p822 = pneg %p122
      $region42: #{groupe_mfpvm_forward.1} parent=39 // pred_check_branch
        %824 = sbr.rel (%p822) target = $region44
      $region43: #{groupe_mfpvm_forward.1} parent=39 // pred_region
        %s825 = smul.u32 2, %s21
        %p826 = scmp.lt.s32.totalorder %s20, 1
        %s827 = scalar_select %p826, %s20, 1
        %p828 = scmp.lt.s32.totalorder %s825, 1
        %s829 = scalar_select %p828, %s825, 1
        %s830 = smul.addr %s827, 32
        %s831 = sadd.s32 %s829, %s830
        %s832 = smul.addr %s831, 4
        %s833 = scalar_lea.vmem %s3, %s832
      $region44: #{groupe_mfpvm_forward.1} parent=39 // pred_fallthru
        _
    $region40: #{groupe_mfpvm_forward.1} parent=5 // pred_fallthru
      _
  $region6: #{groupe_mfpvm_forward.1} parent=0 // loop_footer
    %s13 = sadd.s32 1, %s9
  $region7: #{groupe_mfpvm_forward.1} parent=0 // loop_footer_branch
    %8 = sbr.rel target = $region3
  $region8: #{groupe_mfpvm_forward.1} parent=0 // loop_exit
    _

</llo_original>
